<compile_context>
chip_gen: v5e
topology: v5e:2x2
jax: 0.10.0
libtpu: 0.0.40
codegen_flags: <defaults>
</compile_context>

<pallas_src>
import functools
import math

import numpy as np
import jax
import jax.numpy as jnp
from jax.experimental import pallas as pl
from jax.experimental.pallas import tpu as pltpu


# --------------------------------------------------------------------------- #
# Host-side (numpy) construction of the w_matrix_3d buffer (deterministic).
# --------------------------------------------------------------------------- #
def gen_w_matrix_3d(n):
    """Exact coefficients of the all-pass warping matrix as polynomials in alpha.

    Returns w3d (K, N, N) float32 with
        W_eff(alpha)[i, j] = sum_k alpha**k * w3d[k, i, j]
    and out_frame = in_frame @ W_eff(alpha).  Computed by running the SPTK
    `freqt` recursion on unit vectors with polynomial arithmetic.
    """
    L = 2 * n  # max degree is 2*(n-1)

    def shift(p, k=1):
        out = np.zeros_like(p)
        out[k:] = p[: p.shape[0] - k]
        return out

    w3d = np.zeros((L, n, n), dtype=np.float64)
    for col in range(n):
        c1 = np.zeros(n)
        c1[col] = 1.0
        g = np.zeros((n, L))
        for i in range(n - 1, -1, -1):
            prev = g
            gnew = np.zeros_like(g)
            gnew[0] = shift(prev[0])
            gnew[0][0] += c1[i]
            if n > 1:
                gnew[1] = prev[0] - shift(prev[0], 2) + shift(prev[1])
            for j in range(2, n):
                gnew[j] = prev[j - 1] + shift(prev[j] - gnew[j - 1])
            g = gnew
        for m in range(n):
            w3d[:, col, m] = g[m]

    nz = np.nonzero(np.any(np.abs(w3d) > 1e-12, axis=(1, 2)))[0]
    K = int(nz[-1]) + 1 if nz.size else 1
    return jnp.asarray(w3d[:K], dtype=jnp.float32)


def _round_up(x, m):
    return ((x + m - 1) // m) * m


# --------------------------------------------------------------------------- #
# Tile sizing / VMEM budgeting (v5e/v6e: 128 MiB physical, v7x: 64 MiB physical).
# --------------------------------------------------------------------------- #
_VMEM_TILE_BUDGET = 40 * 1024 * 1024   # leave headroom under v7x's 64 MiB physical


def _vmem_bytes_estimate(n_pad, n_alphas, kn, tf, mxu_bytes):
    f32 = 4
    io = 2 * ((n_pad + n_alphas) * tf * f32 + (n_pad + 1) * tf * f32)  # dbl-buffered in+out
    wgt = 2 * (n_pad * kn * mxu_bytes + n_pad * f32)                   # w_t + c (resident)
    stack = kn * tf * mxu_bytes                                        # stacked MXU operand
    temps = 6 * n_pad * tf * f32                                       # x_t/x_hat/block temps
    return io + wgt + stack + temps


def _pick_tile(tf, f, n_pad, n_alphas, kn, mxu_bytes):
    tf = max(128, _round_up(int(tf), 128))
    f128 = _round_up(max(f, 1), 128)
    # Keep >= ~4 grid steps when there is enough work so the 'parallel' axis still
    # splits across v7x's 2 TensorCores and each core has >= 2 steps to pipeline DMA.
    cap = max(128, _round_up(pl.cdiv(f128, 4), 128))
    tf_eff = min(tf, f128, cap)
    while tf_eff > 128 and _vmem_bytes_estimate(n_pad, n_alphas, kn, tf_eff,
                                                mxu_bytes) > _VMEM_TILE_BUDGET:
        tf_eff = max(128, _round_up(tf_eff // 2, 128))
    return tf_eff


# --------------------------------------------------------------------------- #
# Pallas kernel: fused alpha composition + stacked all-pass warp matmul.
# --------------------------------------------------------------------------- #
def _warp_kernel(x_ref, al_ref, w_ref, c_ref, o_ref, comb_ref,
                 *, n_powers, n_alphas, mxu_dtype):
    c = c_ref[...]                                   # (Np, 1)  = mean / std

    # Natural-layout tiles -> lane-dense via in-kernel (XLU) transpose.
    x_t = jnp.transpose(x_ref[...])                  # (Np, tf)
    al_t = jnp.transpose(al_ref[...])                # (A,  tf)
    x_hat = x_t + c                                  # folded denormalise

    # All-pass composition of alphas: (a + b) / (1 + a*b).
    # approx reciprocal (EUP slot) + one Newton step keeps the divide off the VALU.
    comb = al_t[0:1, :]
    for j in range(1, n_alphas):
        a = al_t[j:j + 1, :]
        denom = 1.0 + comb * a
        r = pl.reciprocal(denom, approx=True)
        r = r * (2.0 - denom * r)                    # Newton refinement
        comb = (comb + a) * r
    comb_ref[...] = comb                             # (1, tf)

    # comb^k for k = 1..K-1 with log-depth squaring (short dependency chains).
    pows = [None] * n_powers
    if n_powers > 1:
        pows[1] = comb
    for k in range(2, n_powers):
        pows[k] = pows[k // 2] * pows[k - k // 2]

    # Stack comb^k * x_hat along the sublane-aligned contraction axis; cast each
    # block to the MXU dtype as it is produced (no second full-size casted copy).
    blocks = [x_hat.astype(mxu_dtype)]
    for k in range(1, n_powers):
        blocks.append((pows[k] * x_hat).astype(mxu_dtype))   # (Np, tf)
    x_stack = jnp.concatenate(blocks, axis=0)        # (K*Np, tf), offsets % Np == 0

    out_t = jnp.dot(w_ref[...], x_stack,
                    preferred_element_type=jnp.float32)      # (Np, tf)
    o_ref[...] = out_t - c                           # folded normalise


def warp_call(x_nat, al_nat, w_t, c, *, tf=4096, mxu_dtype=jnp.float32):
    """x_nat: (F, Np) natural layout, al_nat: (F, A), w_t: (Np, K*Np), c: (Np, 1)
    -> out_t (Np, F_pad) lane-dense, comb_t (1, F_pad)."""
    F, N_pad = x_nat.shape
    A = al_nat.shape[1]
    KN = w_t.shape[1]
    K = KN // N_pad
    mxu_bytes = jnp.dtype(mxu_dtype).itemsize

    tf_eff = _pick_tile(tf, F, N_pad, A, KN, mxu_bytes)
    F_pad = _round_up(F, tf_eff)
    if F_pad != F:
        # Padded frames see x=0, alpha=0 -> comb=0, denom=1 (no NaN); they are
        # trimmed in the wrapper.
        x_nat = jnp.pad(x_nat, ((0, F_pad - F), (0, 0)))
        al_nat = jnp.pad(al_nat, ((0, F_pad - F), (0, 0)))

    est = _vmem_bytes_estimate(N_pad, A, KN, tf_eff, mxu_bytes)
    vmem_limit = int(min(64 * 2 ** 20, max(32 * 2 ** 20, 2 * est)))

    kernel = functools.partial(_warp_kernel, n_powers=K, n_alphas=A,
                               mxu_dtype=mxu_dtype)
    out_t, comb_t = pl.pallas_call(
        kernel,
        out_shape=(
            jax.ShapeDtypeStruct((N_pad, F_pad), jnp.float32),
            jax.ShapeDtypeStruct((1, F_pad), jnp.float32),
        ),
        grid_spec=pltpu.PrefetchScalarGridSpec(
            num_scalar_prefetch=0,
            grid=(F_pad // tf_eff,),
            in_specs=[
                # Natural-layout frame blocks; lane dim == full array extent.
                pl.BlockSpec((tf_eff, N_pad), lambda i: (i, 0)),
                pl.BlockSpec((tf_eff, A), lambda i: (i, 0)),
                # Constant index_maps -> Pallas keeps these resident across steps.
                pl.BlockSpec((N_pad, KN), lambda i: (0, 0)),
                pl.BlockSpec((N_pad, 1), lambda i: (0, 0)),
            ],
            out_specs=[
                pl.BlockSpec((N_pad, tf_eff), lambda i: (0, i)),   # lane-dense output
                pl.BlockSpec((1, tf_eff), lambda i: (0, i)),
            ],
        ),
        compiler_params=pltpu.CompilerParams(
            dimension_semantics=("parallel",),       # shard F tiles across TCs (v7x)
            vmem_limit_bytes=vmem_limit,
        ),
    )(x_nat, al_nat, w_t, c)
    return out_t, comb_t


# --------------------------------------------------------------------------- #
# AllPassWarpLayer.forward (batch_first=True)
# --------------------------------------------------------------------------- #
def all_pass_warp_layer_forward(inputs, lengths, max_lengths, params,
                                *, tf=4096, use_bf16=False):
    """inputs = (x, alpha_in_0, alpha_in_1, ...).
    Returns ([output, combined_alphas, *alphas],
             {'lengths': lengths, 'max_lengths': max_lengths})."""
    x, *alpha_inputs = inputs
    P = params["n_frames_per_step"]
    w3d = params["w3d"]                              # (K, N, N)
    mean = params["mean"].astype(jnp.float32)
    std = params["std_dev"].astype(jnp.float32)
    B, Tf_, N = x.shape
    F = B * Tf_

    # get_alphas: per-layer Linear + tanh * range (tiny; left to XLA, also outputs).
    alphas = []
    for xin, (w, b), rng in zip(alpha_inputs, params["alpha_layers"],
                                params["alpha_ranges"]):
        Bi, T, D = xin.shape
        a = jnp.tanh(xin.astype(jnp.float32) @ w + b) * rng      # (B, T, P)
        alphas.append(a.reshape(Bi, T * P, 1))

    # Natural layouts (no wrapper-side HBM transpose): (F, A) and (F, N).
    al_nat = jnp.concatenate(alphas, axis=-1).reshape(F, len(alphas))
    x_nat = x.reshape(F, N).astype(jnp.float32)

    # Pad the feature axis to a multiple of 8 (sublane-aligned stacking).
    N_pad = _round_up(N, 8)
    if N_pad != N:
        x_nat = jnp.pad(x_nat, ((0, 0), (0, N_pad - N)))
        w3d = jnp.pad(w3d, ((0, 0), (0, N_pad - N), (0, N_pad - N)))
        mean = jnp.pad(mean, (0, N_pad - N))
        std = jnp.pad(std, (0, N_pad - N), constant_values=1.0)

    # Pad K so K*N_pad is a multiple of 128 (clean MXU contraction depth).
    K = w3d.shape[0]
    step = 128 // math.gcd(N_pad, 128)
    K_pad = _round_up(K, step)
    if K_pad != K:
        w3d = jnp.pad(w3d, ((0, K_pad - K), (0, 0), (0, 0)))

    # Fold de/normalisation into the weights (once, outside the kernel).
    inv_std = 1.0 / std
    w_scaled = w3d * std[None, :, None] * inv_std[None, None, :]    # (K, Np, Np)[k,i,j]
    w_t = jnp.transpose(w_scaled, (2, 0, 1)).reshape(N_pad, -1)     # (Np, K*Np)[j,k*Np+i]
    c = (mean * inv_std).reshape(N_pad, 1)

    mxu_dtype = jnp.bfloat16 if use_bf16 else jnp.float32
    w_t = w_t.astype(mxu_dtype)

    out_t, comb_t = warp_call(x_nat, al_nat, w_t, c, tf=tf, mxu_dtype=mxu_dtype)

    # Single remaining transpose back to the layer's (B, T, N) output contract.
    output = out_t[:N, :F].T.reshape(B, Tf_, N)
    combined_alphas = comb_t[0, :F].reshape(B, Tf_, 1)
    return ([output, combined_alphas, *alphas],
            {"lengths": lengths, "max_lengths": max_lengths})


# --------------------------------------------------------------------------- #
# Pure-JAX reference (for verification)
# --------------------------------------------------------------------------- #
def reference_forward(inputs, params):
    x, *alpha_inputs = inputs
    P = params["n_frames_per_step"]
    alphas = []
    for xin, (w, b), rng in zip(alpha_inputs, params["alpha_layers"],
                                params["alpha_ranges"]):
        B, T, D = xin.shape
        a = jnp.tanh(xin @ w + b) * rng
        alphas.append(a.reshape(B, T * P, 1))
    comb = alphas[0]
    for a in alphas[1:]:
        comb = (comb + a) / (1.0 + comb * a)
    w3d = params["w3d"]
    mean, std = params["mean"], params["std_dev"]
    xd = x * std + mean
    K = w3d.shape[0]
    pow_list = [jnp.ones_like(comb)]
    for _ in range(1, K):
        pow_list.append(pow_list[-1] * comb)
    pows = jnp.concatenate(pow_list, axis=-1)                       # (B, Tf, K)
    weff = jnp.einsum("btk,knm->btnm", pows, w3d)
    out = jnp.einsum("btn,btnm->btm", xd, weff)
    out = (out - mean) / std
    return out, comb, alphas


# --------------------------------------------------------------------------- #
if __name__ == "__main__":
    master = jax.random.PRNGKey(0)

    def make_case(key, B, T, N, alpha_dims, P=1):
        n_a = len(alpha_dims)
        keys = jax.random.split(key, 2 + 2 * n_a + 1)
        x = jax.random.normal(keys[0], (B, T * P, N), jnp.float32)
        alpha_in = [jax.random.normal(keys[1 + i], (B, T, d), jnp.float32)
                    for i, d in enumerate(alpha_dims)]
        alpha_layers = []
        for i, d in enumerate(alpha_dims):
            bound = 1.0 / np.sqrt(d)
            w = jax.random.uniform(keys[1 + n_a + i], (d, P),
                                   jnp.float32, -bound, bound)
            b = jax.random.uniform(keys[1 + 2 * n_a + i - 1], (1, P),
                                   jnp.float32, -bound, bound)
            alpha_layers.append((w, b))
        params = {
            "n_frames_per_step": P,
            "alpha_layers": alpha_layers,
            "alpha_ranges": [0.2, 0.1][:n_a],
            "w3d": gen_w_matrix_3d(N),
            "mean": jax.random.normal(keys[-1], (N,), jnp.float32) * 0.5,
            "std_dev": jnp.linspace(0.5, 1.5, N, jnp.float32),
        }
        lengths = jnp.full((B,), T, jnp.int32)
        max_lengths = jnp.asarray(T, jnp.int32)
        return x, alpha_in, params, lengths, max_lengths

    def run(case, *, tf, use_bf16):
        x, alpha_in, params, lengths, max_lengths = case
        outs, _ = all_pass_warp_layer_forward(
            (x, *alpha_in), lengths, max_lengths, params,
            tf=tf, use_bf16=use_bf16)
        outs = jax.block_until_ready(outs)
        ref = reference_forward((x, *alpha_in), params)
        return outs, ref

    def check_f32(case, *, tf, out_tol=5e-3):
        (output, combined_alphas, *alphas), (ref_out, ref_comb, ref_alphas) = run(
            case, tf=tf, use_bf16=False)
        np.testing.assert_allclose(np.asarray(output), np.asarray(ref_out),
                                   rtol=out_tol, atol=out_tol)
        np.testing.assert_allclose(np.asarray(combined_alphas),
                                   np.asarray(ref_comb), rtol=1e-4, atol=1e-5)
        for a, ra in zip(alphas, ref_alphas):
            np.testing.assert_allclose(np.asarray(a), np.asarray(ra),
                                       rtol=1e-5, atol=1e-6)

    def smoke_bf16(case, *, tf):
        # Opt-in bf16 MXU-operand path: only sanity-checked (loose bound), since the
        # folded warp weights have large dynamic range (see TODO on bf16 accuracy).
        (output, combined_alphas, *_), (ref_out, ref_comb, _) = run(
            case, tf=tf, use_bf16=True)
        assert np.all(np.isfinite(np.asarray(output)))
        np.testing.assert_allclose(np.asarray(combined_alphas),
                                   np.asarray(ref_comb), rtol=1e-4, atol=1e-5)
        np.testing.assert_allclose(np.asarray(output), np.asarray(ref_out),
                                   rtol=0.5, atol=0.75)

    k1, k2, k3 = jax.random.split(master, 3)

    # Small case: B=2, T=8, N=16 (single frame tile).
    case_small = make_case(k1, B=2, T=8, N=16, alpha_dims=[32, 24])
    check_f32(case_small, tf=4096)

    # Multi-tile grid + frame padding (F=300 -> 3 tiles of 128).
    case_multi = make_case(k2, B=2, T=150, N=16, alpha_dims=[32, 24])
    check_f32(case_multi, tf=4096)

    # Larger F exercising tf_eff>128 and end-padding (F=514 -> tiles of 256).
    case_pad = make_case(k3, B=2, T=257, N=16, alpha_dims=[32, 24])
    check_f32(case_pad, tf=4096)

    # bf16 MXU operands (v6e/v7x fast path) — smoke test only.
    smoke_bf16(case_small, tf=4096)

    print("KERNEL_OK")
</pallas_src>

<mosaic_0001>
module attributes {stable_mosaic.version = 11 : i64} {
  func.func @_warp_kernel(%arg0: i32, %arg1: memref<128x16xf32, #tpu.memory_space<vmem>>, %arg2: memref<128x2xf32, #tpu.memory_space<vmem>>, %arg3: memref<16x512xf32, #tpu.memory_space<vmem>>, %arg4: memref<16x1xf32, #tpu.memory_space<vmem>>, %arg5: memref<16x128xf32, #tpu.memory_space<vmem>>, %arg6: memref<1x128xf32, #tpu.memory_space<vmem>>) attributes {dimension_semantics = [#tpu.dimension_semantics<parallel>], iteration_bounds = array<i64: 1>, scalar_prefetch = 0 : i64, scratch_operands = 0 : i64, tpu.core_type = #tpu.core_type<tc>, window_params = [{transform_indices = @transform_0, window_bounds = array<i64: 128, 16>}, {transform_indices = @transform_1, window_bounds = array<i64: 128, 2>}, {pipeline_mode = #tpu.pipeline_mode<synchronous>, transform_indices = @transform_2, window_bounds = array<i64: 16, 512>}, {pipeline_mode = #tpu.pipeline_mode<synchronous>, transform_indices = @transform_3, window_bounds = array<i64: 16, 1>}, {transform_indices = @transform_4, window_bounds = array<i64: 16, 128>}, {transform_indices = @transform_5, window_bounds = array<i64: 1, 128>}]} {
    %c0 = arith.constant 0 : index
    %c0_0 = arith.constant 0 : index
    %0 = vector.load %arg4[%c0, %c0_0] : memref<16x1xf32, #tpu.memory_space<vmem>>, vector<16x1xf32>
    %c0_1 = arith.constant 0 : index
    %c0_2 = arith.constant 0 : index
    %1 = vector.load %arg1[%c0_1, %c0_2] : memref<128x16xf32, #tpu.memory_space<vmem>>, vector<128x16xf32>
    %2 = tpu.transpose %1, [1, 0] : vector<128x16xf32> -> vector<16x128xf32>
    %c0_3 = arith.constant 0 : index
    %c0_4 = arith.constant 0 : index
    %3 = vector.load %arg2[%c0_3, %c0_4] : memref<128x2xf32, #tpu.memory_space<vmem>>, vector<128x2xf32>
    %4 = tpu.transpose %3, [1, 0] : vector<128x2xf32> -> vector<2x128xf32>
    %5 = vector.broadcast %0 : vector<16x1xf32> to vector<16x128xf32>
    %6 = arith.addf %2, %5 : vector<16x128xf32>
    %7 = vector.extract_strided_slice %4 {offsets = [0, 0], sizes = [1, 128], strides = [1, 1]} : vector<2x128xf32> to vector<1x128xf32>
    %8 = vector.extract_strided_slice %4 {offsets = [1, 0], sizes = [1, 128], strides = [1, 1]} : vector<2x128xf32> to vector<1x128xf32>
    %9 = arith.mulf %7, %8 : vector<1x128xf32>
    %cst = arith.constant 1.000000e+00 : f32
    %10 = vector.broadcast %cst : f32 to vector<1x128xf32>
    %11 = arith.addf %10, %9 : vector<1x128xf32>
    %12 = tpu.reciprocal %11 {approx = true} : vector<1x128xf32> -> vector<1x128xf32>
    %13 = arith.mulf %11, %12 : vector<1x128xf32>
    %cst_5 = arith.constant 2.000000e+00 : f32
    %14 = vector.broadcast %cst_5 : f32 to vector<1x128xf32>
    %15 = arith.subf %14, %13 : vector<1x128xf32>
    %16 = arith.mulf %12, %15 : vector<1x128xf32>
    %17 = arith.addf %7, %8 : vector<1x128xf32>
    %18 = arith.mulf %17, %16 : vector<1x128xf32>
    %c0_6 = arith.constant 0 : index
    %c0_7 = arith.constant 0 : index
    %19 = vector.load %arg6[%c0_6, %c0_7] : memref<1x128xf32, #tpu.memory_space<vmem>>, vector<1x128xf32>
    tpu.vector_store %arg6[%c0_6, %c0_7], %18 {strides = array<i32>} : memref<1x128xf32, #tpu.memory_space<vmem>>, vector<1x128xf32>,
    %20 = arith.mulf %18, %18 : vector<1x128xf32>
    %21 = arith.mulf %18, %20 : vector<1x128xf32>
    %22 = arith.mulf %20, %20 : vector<1x128xf32>
    %23 = arith.mulf %20, %21 : vector<1x128xf32>
    %24 = arith.mulf %21, %21 : vector<1x128xf32>
    %25 = arith.mulf %21, %22 : vector<1x128xf32>
    %26 = arith.mulf %22, %22 : vector<1x128xf32>
    %27 = arith.mulf %22, %23 : vector<1x128xf32>
    %28 = arith.mulf %23, %23 : vector<1x128xf32>
    %29 = arith.mulf %23, %24 : vector<1x128xf32>
    %30 = arith.mulf %24, %24 : vector<1x128xf32>
    %31 = arith.mulf %24, %25 : vector<1x128xf32>
    %32 = arith.mulf %25, %25 : vector<1x128xf32>
    %33 = arith.mulf %25, %26 : vector<1x128xf32>
    %34 = arith.mulf %26, %26 : vector<1x128xf32>
    %35 = arith.mulf %26, %27 : vector<1x128xf32>
    %36 = arith.mulf %27, %27 : vector<1x128xf32>
    %37 = arith.mulf %27, %28 : vector<1x128xf32>
    %38 = arith.mulf %28, %28 : vector<1x128xf32>
    %39 = arith.mulf %28, %29 : vector<1x128xf32>
    %40 = arith.mulf %29, %29 : vector<1x128xf32>
    %41 = arith.mulf %29, %30 : vector<1x128xf32>
    %42 = arith.mulf %30, %30 : vector<1x128xf32>
    %43 = arith.mulf %30, %31 : vector<1x128xf32>
    %44 = arith.mulf %31, %31 : vector<1x128xf32>
    %45 = arith.mulf %31, %32 : vector<1x128xf32>
    %46 = arith.mulf %32, %32 : vector<1x128xf32>
    %47 = arith.mulf %32, %33 : vector<1x128xf32>
    %48 = arith.mulf %33, %33 : vector<1x128xf32>
    %49 = arith.mulf %33, %34 : vector<1x128xf32>
    %50 = vector.broadcast %18 : vector<1x128xf32> to vector<16x128xf32>
    %51 = arith.mulf %50, %6 : vector<16x128xf32>
    %52 = vector.broadcast %20 : vector<1x128xf32> to vector<16x128xf32>
    %53 = arith.mulf %52, %6 : vector<16x128xf32>
    %54 = vector.broadcast %21 : vector<1x128xf32> to vector<16x128xf32>
    %55 = arith.mulf %54, %6 : vector<16x128xf32>
    %56 = vector.broadcast %22 : vector<1x128xf32> to vector<16x128xf32>
    %57 = arith.mulf %56, %6 : vector<16x128xf32>
    %58 = vector.broadcast %23 : vector<1x128xf32> to vector<16x128xf32>
    %59 = arith.mulf %58, %6 : vector<16x128xf32>
    %60 = vector.broadcast %24 : vector<1x128xf32> to vector<16x128xf32>
    %61 = arith.mulf %60, %6 : vector<16x128xf32>
    %62 = vector.broadcast %25 : vector<1x128xf32> to vector<16x128xf32>
    %63 = arith.mulf %62, %6 : vector<16x128xf32>
    %64 = vector.broadcast %26 : vector<1x128xf32> to vector<16x128xf32>
    %65 = arith.mulf %64, %6 : vector<16x128xf32>
    %66 = vector.broadcast %27 : vector<1x128xf32> to vector<16x128xf32>
    %67 = arith.mulf %66, %6 : vector<16x128xf32>
    %68 = vector.broadcast %28 : vector<1x128xf32> to vector<16x128xf32>
    %69 = arith.mulf %68, %6 : vector<16x128xf32>
    %70 = vector.broadcast %29 : vector<1x128xf32> to vector<16x128xf32>
    %71 = arith.mulf %70, %6 : vector<16x128xf32>
    %72 = vector.broadcast %30 : vector<1x128xf32> to vector<16x128xf32>
    %73 = arith.mulf %72, %6 : vector<16x128xf32>
    %74 = vector.broadcast %31 : vector<1x128xf32> to vector<16x128xf32>
    %75 = arith.mulf %74, %6 : vector<16x128xf32>
    %76 = vector.broadcast %32 : vector<1x128xf32> to vector<16x128xf32>
    %77 = arith.mulf %76, %6 : vector<16x128xf32>
    %78 = vector.broadcast %33 : vector<1x128xf32> to vector<16x128xf32>
    %79 = arith.mulf %78, %6 : vector<16x128xf32>
    %80 = vector.broadcast %34 : vector<1x128xf32> to vector<16x128xf32>
    %81 = arith.mulf %80, %6 : vector<16x128xf32>
    %82 = vector.broadcast %35 : vector<1x128xf32> to vector<16x128xf32>
    %83 = arith.mulf %82, %6 : vector<16x128xf32>
    %84 = vector.broadcast %36 : vector<1x128xf32> to vector<16x128xf32>
    %85 = arith.mulf %84, %6 : vector<16x128xf32>
    %86 = vector.broadcast %37 : vector<1x128xf32> to vector<16x128xf32>
    %87 = arith.mulf %86, %6 : vector<16x128xf32>
    %88 = vector.broadcast %38 : vector<1x128xf32> to vector<16x128xf32>
    %89 = arith.mulf %88, %6 : vector<16x128xf32>
    %90 = vector.broadcast %39 : vector<1x128xf32> to vector<16x128xf32>
    %91 = arith.mulf %90, %6 : vector<16x128xf32>
    %92 = vector.broadcast %40 : vector<1x128xf32> to vector<16x128xf32>
    %93 = arith.mulf %92, %6 : vector<16x128xf32>
    %94 = vector.broadcast %41 : vector<1x128xf32> to vector<16x128xf32>
    %95 = arith.mulf %94, %6 : vector<16x128xf32>
    %96 = vector.broadcast %42 : vector<1x128xf32> to vector<16x128xf32>
    %97 = arith.mulf %96, %6 : vector<16x128xf32>
    %98 = vector.broadcast %43 : vector<1x128xf32> to vector<16x128xf32>
    %99 = arith.mulf %98, %6 : vector<16x128xf32>
    %100 = vector.broadcast %44 : vector<1x128xf32> to vector<16x128xf32>
    %101 = arith.mulf %100, %6 : vector<16x128xf32>
    %102 = vector.broadcast %45 : vector<1x128xf32> to vector<16x128xf32>
    %103 = arith.mulf %102, %6 : vector<16x128xf32>
    %104 = vector.broadcast %46 : vector<1x128xf32> to vector<16x128xf32>
    %105 = arith.mulf %104, %6 : vector<16x128xf32>
    %106 = vector.broadcast %47 : vector<1x128xf32> to vector<16x128xf32>
    %107 = arith.mulf %106, %6 : vector<16x128xf32>
    %108 = vector.broadcast %48 : vector<1x128xf32> to vector<16x128xf32>
    %109 = arith.mulf %108, %6 : vector<16x128xf32>
    %110 = vector.broadcast %49 : vector<1x128xf32> to vector<16x128xf32>
    %111 = arith.mulf %110, %6 : vector<16x128xf32>
    %112 = tpu.concatenate %6, %51, %53, %55, %57, %59, %61, %63, %65, %67, %69, %71, %73, %75, %77, %79 in 0 : vector<16x128xf32>, vector<16x128xf32>, vector<16x128xf32>, vector<16x128xf32>, vector<16x128xf32>, vector<16x128xf32>, vector<16x128xf32>, vector<16x128xf32>, vector<16x128xf32>, vector<16x128xf32>, vector<16x128xf32>, vector<16x128xf32>, vector<16x128xf32>, vector<16x128xf32>, vector<16x128xf32>, vector<16x128xf32> -> vector<256x128xf32>
    %113 = tpu.concatenate %81, %83, %85, %87, %89, %91, %93, %95, %97, %99, %101, %103, %105, %107, %109, %111 in 0 : vector<16x128xf32>, vector<16x128xf32>, vector<16x128xf32>, vector<16x128xf32>, vector<16x128xf32>, vector<16x128xf32>, vector<16x128xf32>, vector<16x128xf32>, vector<16x128xf32>, vector<16x128xf32>, vector<16x128xf32>, vector<16x128xf32>, vector<16x128xf32>, vector<16x128xf32>, vector<16x128xf32>, vector<16x128xf32> -> vector<256x128xf32>
    %114 = tpu.concatenate %112, %113 in 0 : vector<256x128xf32>, vector<256x128xf32> -> vector<512x128xf32>
    %c0_8 = arith.constant 0 : index
    %c0_9 = arith.constant 0 : index
    %115 = vector.load %arg3[%c0_8, %c0_9] : memref<16x512xf32, #tpu.memory_space<vmem>>, vector<16x512xf32>
    %cst_10 = arith.constant dense<0.000000e+00> : vector<16x128xf32>
    %116 = tpu.matmul %115, %114, %cst_10 {dimension_numbers = #tpu.dot_dimension_numbers<[1], [0], [0], [1], [0, 0, 1, 1], [], []>} : vector<16x512xf32>, vector<512x128xf32>, vector<16x128xf32> -> vector<16x128xf32>
    %117 = vector.broadcast %0 : vector<16x1xf32> to vector<16x128xf32>
    %118 = arith.subf %116, %117 : vector<16x128xf32>
    %c0_11 = arith.constant 0 : index
    %c0_12 = arith.constant 0 : index
    %119 = vector.load %arg5[%c0_11, %c0_12] : memref<16x128xf32, #tpu.memory_space<vmem>>, vector<16x128xf32>
    tpu.vector_store %arg5[%c0_11, %c0_12], %118 {strides = array<i32>} : memref<16x128xf32, #tpu.memory_space<vmem>>, vector<16x128xf32>,
    return
  }
  func.func @transform_0(%arg0: i32) -> (i32, i32) {
    %c0_i32 = arith.constant 0 : i32
    %c0_i32_0 = arith.constant 0 : i32
    return %arg0, %c0_i32 : i32, i32
  }
  func.func @transform_1(%arg0: i32) -> (i32, i32) {
    %c0_i32 = arith.constant 0 : i32
    %c0_i32_0 = arith.constant 0 : i32
    return %arg0, %c0_i32 : i32, i32
  }
  func.func @transform_2(%arg0: i32) -> (i32, i32) {
    %c0_i32 = arith.constant 0 : i32
    %c0_i32_0 = arith.constant 0 : i32
    %c0_i32_1 = arith.constant 0 : i32
    return %c0_i32, %c0_i32_0 : i32, i32
  }
  func.func @transform_3(%arg0: i32) -> (i32, i32) {
    %c0_i32 = arith.constant 0 : i32
    %c0_i32_0 = arith.constant 0 : i32
    %c0_i32_1 = arith.constant 0 : i32
    return %c0_i32, %c0_i32_0 : i32, i32
  }
  func.func @transform_4(%arg0: i32) -> (i32, i32) {
    %c0_i32 = arith.constant 0 : i32
    %c0_i32_0 = arith.constant 0 : i32
    return %c0_i32, %arg0 : i32, i32
  }
  func.func @transform_5(%arg0: i32) -> (i32, i32) {
    %c0_i32 = arith.constant 0 : i32
    %c0_i32_0 = arith.constant 0 : i32
    return %c0_i32, %arg0 : i32, i32
  }
}

</mosaic_0001>

<llo_original>
// kernel: tpu_custom_call.1
$region0: #{tpu_custom_call.1}
  #allocation0 [shape = 'u32[]', space=smem, size = 0x4, offset = 0x4, fixed_abs, tag = 'smem constant byte address 0x4 - core index']
  #allocation1 [shape = 'u32[72,128]{1,0:T(1,128)}', space=vmem, size = 0x9000, scoped, tag = 'internal scratch']
  %s0 = inlined_call_operand.vmem [shape: f32[128,16], index: 0, kind: input, shape index: {}]
  %s1 = inlined_call_operand.vmem [shape: f32[128,2], index: 1, kind: input, shape index: {}]
  %s2 = inlined_call_operand.vmem [shape: f32[16,512], index: 2, kind: input, shape index: {}]
  %s3 = inlined_call_operand.vmem [shape: f32[16,1], index: 3, kind: input, shape index: {}]
  %s4 = inlined_call_operand.hbm [shape: f32[16,128], index: 4, kind: output, shape index: {0}]
  %s5 = inlined_call_operand.hbm [shape: f32[1,128], index: 5, kind: output, shape index: {1}]
  %6 = xla_tuple %s4, %s5
  %s7 = sld [smem:[#allocation0]]
  $region34: #{tpu_custom_call.1} parent=0
    _
  %s9 = ssub.s32 1, %s7
  %s10 = scalar_select 0, %s9, %s7
  $region1: #{tpu_custom_call.1} parent=0
    #allocation2 [shape = 'u8[8192]{0}', space=vmem, size = 0x2000, scoped, tag = 'output window, operand 0, single buffered']
    #allocation3 [shape = 's32[1]{0}', space=sflag, size = 0x4, scoped, tag = 'scoped memory for tpu_custom_call.1']
    #allocation4 [shape = 'u8[512]{0}', space=vmem, size = 0x400, scoped, tag = 'output window, operand 1, single buffered']
    #allocation5 [shape = 's32[1]{0}', space=sflag, size = 0x4, scoped, tag = 'scoped memory for tpu_custom_call.1']
    %11 = vsyncpa [#allocation3], 0
    %12 = vsyncpa [#allocation5], 0
    // Predicated region
    $region2: #{tpu_custom_call.1} parent=1 // pred_check
      _
    $region3: #{tpu_custom_call.1} parent=1 // pred_check_branch
      %14 = sbr.rel (0) target = $region5
    $region4: #{tpu_custom_call.1} parent=1 // pred_region
      _
    $region5: #{tpu_custom_call.1} parent=1 // pred_fallthru
      _
    // Predicated region
    $region6: #{tpu_custom_call.1} parent=1 // pred_check
      _
    $region7: #{tpu_custom_call.1} parent=1 // pred_check_branch
      %16 = sbr.rel (0) target = $region9
    $region8: #{tpu_custom_call.1} parent=1 // pred_region
      _
    $region9: #{tpu_custom_call.1} parent=1 // pred_fallthru
      _
    // Predicated region
    $region10: #{tpu_custom_call.1} parent=1 // pred_check
      _
    $region11: #{tpu_custom_call.1} parent=1 // pred_check_branch
      %18 = sbr.rel (0) target = $region13
    $region12: #{tpu_custom_call.1} parent=1 // pred_region
      _
    $region13: #{tpu_custom_call.1} parent=1 // pred_fallthru
      _
    // Predicated region
    $region14: #{tpu_custom_call.1} parent=1 // pred_check
      _
    $region15: #{tpu_custom_call.1} parent=1 // pred_check_branch
      %20 = sbr.rel (0) target = $region17
    $region16: #{tpu_custom_call.1} parent=1 // pred_region
      _
    $region17: #{tpu_custom_call.1} parent=1 // pred_fallthru
      _
    %v21 = vld [vmem:[%s3] sm:$0xff]
    %v22 = vld [vmem:[%s3 + $0x8] sm:$0xff]
    %v23 = vld [vmem:[%s0] sm:$0xff]
    %v24 = vld [vmem:[%s0 + $0x8] sm:$0xff]
    %v25 = vld [vmem:[%s0 + $0x10] sm:$0xff]
    %v26 = vld [vmem:[%s0 + $0x18] sm:$0xff]
    %v27 = vld [vmem:[%s0 + $0x20] sm:$0xff]
    %v28 = vld [vmem:[%s0 + $0x28] sm:$0xff]
    %v29 = vld [vmem:[%s0 + $0x30] sm:$0xff]
    %v30 = vld [vmem:[%s0 + $0x38] sm:$0xff]
    %v31 = vld [vmem:[%s0 + $0x40] sm:$0xff]
    %v32 = vld [vmem:[%s0 + $0x48] sm:$0xff]
    %v33 = vld [vmem:[%s0 + $0x50] sm:$0xff]
    %v34 = vld [vmem:[%s0 + $0x58] sm:$0xff]
    %v35 = vld [vmem:[%s0 + $0x60] sm:$0xff]
    %v36 = vld [vmem:[%s0 + $0x68] sm:$0xff]
    %v37 = vld [vmem:[%s0 + $0x70] sm:$0xff]
    %v38 = vld [vmem:[%s0 + $0x78] sm:$0xff]
    %39 = vxpose.xlu0.b32.start [1/16] %v23, 128
    %40 = vxpose.xlu0.b32.cont [2/16] %v24, 128
    %41 = vxpose.xlu0.b32.cont [3/16] %v25, 128
    %42 = vxpose.xlu0.b32.cont [4/16] %v26, 128
    %43 = vxpose.xlu0.b32.cont [5/16] %v27, 128
    %44 = vxpose.xlu0.b32.cont [6/16] %v28, 128
    %45 = vxpose.xlu0.b32.cont [7/16] %v29, 128
    %46 = vxpose.xlu0.b32.cont [8/16] %v30, 128
    %47 = vxpose.xlu0.b32.cont [9/16] %v31, 128
    %48 = vxpose.xlu0.b32.cont [10/16] %v32, 128
    %49 = vxpose.xlu0.b32.cont [11/16] %v33, 128
    %50 = vxpose.xlu0.b32.cont [12/16] %v34, 128
    %51 = vxpose.xlu0.b32.cont [13/16] %v35, 128
    %52 = vxpose.xlu0.b32.cont [14/16] %v36, 128
    %53 = vxpose.xlu0.b32.cont [15/16] %v37, 128
    %54 = vxpose.xlu0.b32.end [16/16] %v38, 128
    %v55 = vpop.trf.xlu0
    %v56 = vpop.trf.xlu0
    %v57 = vpop.trf.xlu0
    %v58 = vpop.trf.xlu0
    %v59 = vpop.trf.xlu0
    %v60 = vpop.trf.xlu0
    %v61 = vpop.trf.xlu0
    %v62 = vpop.trf.xlu0
    %v63 = vpop.trf.xlu0
    %v64 = vpop.trf.xlu0
    %v65 = vpop.trf.xlu0
    %v66 = vpop.trf.xlu0
    %v67 = vpop.trf.xlu0
    %v68 = vpop.trf.xlu0
    %v69 = vpop.trf.xlu0
    %v70 = vpop.trf.xlu0
    %v71 = vld [vmem:[%s1] sm:$0xff]
    %v72 = vld [vmem:[%s1 + $0x8] sm:$0xff]
    %v73 = vld [vmem:[%s1 + $0x10] sm:$0xff]
    %v74 = vld [vmem:[%s1 + $0x18] sm:$0xff]
    %v75 = vld [vmem:[%s1 + $0x20] sm:$0xff]
    %v76 = vld [vmem:[%s1 + $0x28] sm:$0xff]
    %v77 = vld [vmem:[%s1 + $0x30] sm:$0xff]
    %v78 = vld [vmem:[%s1 + $0x38] sm:$0xff]
    %v79 = vld [vmem:[%s1 + $0x40] sm:$0xff]
    %v80 = vld [vmem:[%s1 + $0x48] sm:$0xff]
    %v81 = vld [vmem:[%s1 + $0x50] sm:$0xff]
    %v82 = vld [vmem:[%s1 + $0x58] sm:$0xff]
    %v83 = vld [vmem:[%s1 + $0x60] sm:$0xff]
    %v84 = vld [vmem:[%s1 + $0x68] sm:$0xff]
    %v85 = vld [vmem:[%s1 + $0x70] sm:$0xff]
    %v86 = vld [vmem:[%s1 + $0x78] sm:$0xff]
    %87 = vxpose.xlu0.b32.start [1/16] %v71, 128
    %88 = vxpose.xlu0.b32.cont [2/16] %v72, 128
    %89 = vxpose.xlu0.b32.cont [3/16] %v73, 128
    %90 = vxpose.xlu0.b32.cont [4/16] %v74, 128
    %91 = vxpose.xlu0.b32.cont [5/16] %v75, 128
    %92 = vxpose.xlu0.b32.cont [6/16] %v76, 128
    %93 = vxpose.xlu0.b32.cont [7/16] %v77, 128
    %94 = vxpose.xlu0.b32.cont [8/16] %v78, 128
    %95 = vxpose.xlu0.b32.cont [9/16] %v79, 128
    %96 = vxpose.xlu0.b32.cont [10/16] %v80, 128
    %97 = vxpose.xlu0.b32.cont [11/16] %v81, 128
    %98 = vxpose.xlu0.b32.cont [12/16] %v82, 128
    %99 = vxpose.xlu0.b32.cont [13/16] %v83, 128
    %100 = vxpose.xlu0.b32.cont [14/16] %v84, 128
    %101 = vxpose.xlu0.b32.cont [15/16] %v85, 128
    %102 = vxpose.xlu0.b32.end [16/16] %v86, 128
    %v103 = vpop.trf.xlu0
    %v104 = vpop.trf.xlu0
    %v105 = vpop.trf.xlu0
    %v106 = vpop.trf.xlu0
    %v107 = vpop.trf.xlu0
    %v108 = vpop.trf.xlu0
    %v109 = vpop.trf.xlu0
    %v110 = vpop.trf.xlu0
    %v111 = vpop.trf.xlu0
    %v112 = vpop.trf.xlu0
    %v113 = vpop.trf.xlu0
    %v114 = vpop.trf.xlu0
    %v115 = vpop.trf.xlu0
    %v116 = vpop.trf.xlu0
    %v117 = vpop.trf.xlu0
    %v118 = vpop.trf.xlu0
    %120 = vset.pattern.permute.xlu0 0
    %121 = vperm.xlu0 %120, %v21
    %v122 = vpop.permute.xlu0 %121
    %125 = vset.pattern.permute.xlu0 0
    %126 = vperm.xlu0 %125, %v22
    %v127 = vpop.permute.xlu0 %126
    %v129 = vadd.f32 %v55, %v122
    %v130 = vadd.f32 %v56, %v127
    %v132 = vrot.slane %v103, 1
    %v134 = vmul.f32 %v103, %v132
    %v135 = vadd.f32 %v134, 1.0
    %v136 = vrcp.pop %v135
    %v137 = vmul.f32 %v135, %v136
    %v138 = vsub.f32 2.0, %v137
    %v139 = vmul.f32 %v136, %v138
    %v140 = vadd.f32 %v103, %v132
    %v141 = vmul.f32 %v140, %v139
    %142 = vst [vmem:[#allocation4] sm:$0x1] %v141
    %v143 = vmul.f32 %v141, %v141
    %v144 = vmul.f32 %v141, %v143
    %v145 = vmul.f32 %v143, %v143
    %v146 = vmul.f32 %v143, %v144
    %v147 = vmul.f32 %v144, %v144
    %v148 = vmul.f32 %v144, %v145
    %v149 = vmul.f32 %v145, %v145
    %v150 = vmul.f32 %v145, %v146
    %v151 = vmul.f32 %v146, %v146
    %v152 = vmul.f32 %v146, %v147
    %v153 = vmul.f32 %v147, %v147
    %v154 = vmul.f32 %v147, %v148
    %v155 = vmul.f32 %v148, %v148
    %v156 = vmul.f32 %v148, %v149
    %v157 = vmul.f32 %v149, %v149
    %v158 = vmul.f32 %v149, %v150
    %v159 = vmul.f32 %v150, %v150
    %v160 = vmul.f32 %v150, %v151
    %v161 = vmul.f32 %v151, %v151
    %v162 = vmul.f32 %v151, %v152
    %v163 = vmul.f32 %v152, %v152
    %v164 = vmul.f32 %v152, %v153
    %v165 = vmul.f32 %v153, %v153
    %v166 = vmul.f32 %v153, %v154
    %v167 = vmul.f32 %v154, %v154
    %v168 = vmul.f32 %v154, %v155
    %v169 = vmul.f32 %v155, %v155
    %v170 = vmul.f32 %v155, %v156
    %v171 = vmul.f32 %v156, %v156
    %v172 = vmul.f32 %v156, %v157
    %v173 = vperm.slane %v141, 0
    %v174 = vmul.f32 %v173, %v129
    %v175 = vmul.f32 %v173, %v130
    %v176 = vperm.slane %v143, 0
    %v177 = vmul.f32 %v176, %v129
    %v178 = vmul.f32 %v176, %v130
    %v179 = vperm.slane %v144, 0
    %v180 = vmul.f32 %v179, %v129
    %v181 = vmul.f32 %v179, %v130
    %v182 = vperm.slane %v145, 0
    %v183 = vmul.f32 %v182, %v129
    %v184 = vmul.f32 %v182, %v130
    %v185 = vperm.slane %v146, 0
    %v186 = vmul.f32 %v185, %v129
    %v187 = vmul.f32 %v185, %v130
    %v188 = vperm.slane %v147, 0
    %v189 = vmul.f32 %v188, %v129
    %v190 = vmul.f32 %v188, %v130
    %v191 = vperm.slane %v148, 0
    %v192 = vmul.f32 %v191, %v129
    %v193 = vmul.f32 %v191, %v130
    %v194 = vperm.slane %v149, 0
    %v195 = vmul.f32 %v194, %v129
    %v196 = vmul.f32 %v194, %v130
    %v197 = vperm.slane %v150, 0
    %v198 = vmul.f32 %v197, %v129
    %v199 = vmul.f32 %v197, %v130
    %v200 = vperm.slane %v151, 0
    %v201 = vmul.f32 %v200, %v129
    %v202 = vmul.f32 %v200, %v130
    %v203 = vperm.slane %v152, 0
    %v204 = vmul.f32 %v203, %v129
    %v205 = vmul.f32 %v203, %v130
    %v206 = vperm.slane %v153, 0
    %v207 = vmul.f32 %v206, %v129
    %v208 = vmul.f32 %v206, %v130
    %v209 = vperm.slane %v154, 0
    %v210 = vmul.f32 %v209, %v129
    %v211 = vmul.f32 %v209, %v130
    %v212 = vperm.slane %v155, 0
    %v213 = vmul.f32 %v212, %v129
    %v214 = vmul.f32 %v212, %v130
    %v215 = vperm.slane %v156, 0
    %v216 = vmul.f32 %v215, %v129
    %v217 = vmul.f32 %v215, %v130
    %v218 = vperm.slane %v157, 0
    %v219 = vmul.f32 %v218, %v129
    %v220 = vmul.f32 %v218, %v130
    %v221 = vperm.slane %v158, 0
    %v222 = vmul.f32 %v221, %v129
    %v223 = vmul.f32 %v221, %v130
    %v224 = vperm.slane %v159, 0
    %v225 = vmul.f32 %v224, %v129
    %v226 = vmul.f32 %v224, %v130
    %v227 = vperm.slane %v160, 0
    %v228 = vmul.f32 %v227, %v129
    %v229 = vmul.f32 %v227, %v130
    %v230 = vperm.slane %v161, 0
    %v231 = vmul.f32 %v230, %v129
    %v232 = vmul.f32 %v230, %v130
    %v233 = vperm.slane %v162, 0
    %v234 = vmul.f32 %v233, %v129
    %v235 = vmul.f32 %v233, %v130
    %v236 = vperm.slane %v163, 0
    %v237 = vmul.f32 %v236, %v129
    %v238 = vmul.f32 %v236, %v130
    %v239 = vperm.slane %v164, 0
    %v240 = vmul.f32 %v239, %v129
    %v241 = vmul.f32 %v239, %v130
    %v242 = vperm.slane %v165, 0
    %v243 = vmul.f32 %v242, %v129
    %v244 = vmul.f32 %v242, %v130
    %v245 = vperm.slane %v166, 0
    %v246 = vmul.f32 %v245, %v129
    %v247 = vmul.f32 %v245, %v130
    %v248 = vperm.slane %v167, 0
    %v249 = vmul.f32 %v248, %v129
    %v250 = vmul.f32 %v248, %v130
    %v251 = vperm.slane %v168, 0
    %v252 = vmul.f32 %v251, %v129
    %v253 = vmul.f32 %v251, %v130
    %v254 = vperm.slane %v169, 0
    %v255 = vmul.f32 %v254, %v129
    %v256 = vmul.f32 %v254, %v130
    %v257 = vperm.slane %v170, 0
    %v258 = vmul.f32 %v257, %v129
    %v259 = vmul.f32 %v257, %v130
    %v260 = vperm.slane %v171, 0
    %v261 = vmul.f32 %v260, %v129
    %v262 = vmul.f32 %v260, %v130
    %v263 = vperm.slane %v172, 0
    %v264 = vmul.f32 %v263, %v129
    %v265 = vmul.f32 %v263, %v130
    %v266 = vld [vmem:[%s2] sm:$0xff]
    %v267 = vld [vmem:[%s2 + $0x8] sm:$0xff]
    %v268 = vld [vmem:[%s2 + $0x10] sm:$0xff]
    %v269 = vld [vmem:[%s2 + $0x18] sm:$0xff]
    %v270 = vld [vmem:[%s2 + $0x20] sm:$0xff]
    %v271 = vld [vmem:[%s2 + $0x28] sm:$0xff]
    %v272 = vld [vmem:[%s2 + $0x30] sm:$0xff]
    %v273 = vld [vmem:[%s2 + $0x38] sm:$0xff]
    %274 = vmatpush.msra.mxu0 %v193
    %275 = vmatpush.msra.mxu0 %v192
    %276 = vmatpush.msra.mxu0 %v190
    %277 = vmatpush.msra.mxu0 %v189
    %278 = vmatpush.msra.mxu0 %v187
    %279 = vmatpush.msra.mxu0 %v186
    %280 = vmatpush.msra.mxu0 %v184
    %281 = vmatpush.msra.mxu0 %v183
    %282 = vmatpush.msra.mxu0 %v181
    %283 = vmatpush.msra.mxu0 %v180
    %284 = vmatpush.msra.mxu0 %v178
    %285 = vmatpush.msra.mxu0 %v177
    %286 = vmatpush.msra.mxu0 %v175
    %287 = vmatpush.msra.mxu0 %v174
    %288 = vmatpush.msra.mxu0 %v130
    %289 = vmatpush.msra.mxu0 %v129
    %290 = vmatmul.f32.gmra.mxu0 %v266
    %v291 = vpop.f32.mrf.mxu0
    %v292 = vadd.f32 0.0, %v291
    %293 = vmatmul.f32.gmra.mxu0 %v270
    %v294 = vpop.f32.mrf.mxu0
    %v295 = vadd.f32 0.0, %v294
    %296 = vdwg.mxu0
    %297 = vmatpush.msra.mxu0 %v217
    %298 = vmatpush.msra.mxu0 %v216
    %299 = vmatpush.msra.mxu0 %v214
    %300 = vmatpush.msra.mxu0 %v213
    %301 = vmatpush.msra.mxu0 %v211
    %302 = vmatpush.msra.mxu0 %v210
    %303 = vmatpush.msra.mxu0 %v208
    %304 = vmatpush.msra.mxu0 %v207
    %305 = vmatpush.msra.mxu0 %v205
    %306 = vmatpush.msra.mxu0 %v204
    %307 = vmatpush.msra.mxu0 %v202
    %308 = vmatpush.msra.mxu0 %v201
    %309 = vmatpush.msra.mxu0 %v199
    %310 = vmatpush.msra.mxu0 %v198
    %311 = vmatpush.msra.mxu0 %v196
    %312 = vmatpush.msra.mxu0 %v195
    %313 = vmatmul.f32.gmra.mxu0 %v267
    %v314 = vpop.f32.mrf.mxu0
    %v315 = vadd.f32 %v292, %v314
    %316 = vmatmul.f32.gmra.mxu0 %v271
    %v317 = vpop.f32.mrf.mxu0
    %v318 = vadd.f32 %v295, %v317
    %319 = vdwg.mxu0
    %320 = vmatpush.msra.mxu0 %v241
    %321 = vmatpush.msra.mxu0 %v240
    %322 = vmatpush.msra.mxu0 %v238
    %323 = vmatpush.msra.mxu0 %v237
    %324 = vmatpush.msra.mxu0 %v235
    %325 = vmatpush.msra.mxu0 %v234
    %326 = vmatpush.msra.mxu0 %v232
    %327 = vmatpush.msra.mxu0 %v231
    %328 = vmatpush.msra.mxu0 %v229
    %329 = vmatpush.msra.mxu0 %v228
    %330 = vmatpush.msra.mxu0 %v226
    %331 = vmatpush.msra.mxu0 %v225
    %332 = vmatpush.msra.mxu0 %v223
    %333 = vmatpush.msra.mxu0 %v222
    %334 = vmatpush.msra.mxu0 %v220
    %335 = vmatpush.msra.mxu0 %v219
    %336 = vmatmul.f32.gmra.mxu0 %v268
    %v337 = vpop.f32.mrf.mxu0
    %v338 = vadd.f32 %v315, %v337
    %339 = vmatmul.f32.gmra.mxu0 %v272
    %v340 = vpop.f32.mrf.mxu0
    %v341 = vadd.f32 %v318, %v340
    %342 = vdwg.mxu0
    %343 = vmatpush.msra.mxu0 %v265
    %344 = vmatpush.msra.mxu0 %v264
    %345 = vmatpush.msra.mxu0 %v262
    %346 = vmatpush.msra.mxu0 %v261
    %347 = vmatpush.msra.mxu0 %v259
    %348 = vmatpush.msra.mxu0 %v258
    %349 = vmatpush.msra.mxu0 %v256
    %350 = vmatpush.msra.mxu0 %v255
    %351 = vmatpush.msra.mxu0 %v253
    %352 = vmatpush.msra.mxu0 %v252
    %353 = vmatpush.msra.mxu0 %v250
    %354 = vmatpush.msra.mxu0 %v249
    %355 = vmatpush.msra.mxu0 %v247
    %356 = vmatpush.msra.mxu0 %v246
    %357 = vmatpush.msra.mxu0 %v244
    %358 = vmatpush.msra.mxu0 %v243
    %359 = vmatmul.f32.gmra.mxu0 %v269
    %v360 = vpop.f32.mrf.mxu0
    %v361 = vadd.f32 %v338, %v360
    %362 = vmatmul.f32.gmra.mxu0 %v273
    %v363 = vpop.f32.mrf.mxu0
    %v364 = vadd.f32 %v341, %v363
    %365 = vdwg.mxu0
    %v366 = vsub.f32 %v361, %v122
    %v367 = vsub.f32 %v364, %v127
    %368 = vst [vmem:[#allocation2] sm:$0xff] %v366
    %369 = vst [vmem:[#allocation2 + $0x8] sm:$0xff] %v367
    // Predicated region
    $region18: #{tpu_custom_call.1} parent=1 // pred_check
      _
    $region19: #{tpu_custom_call.1} parent=1 // pred_check_branch
      %371 = sbr.rel (0) target = $region21
    $region20: #{tpu_custom_call.1} parent=1 // pred_region
      %373 = vsyncadd [#allocation3], 0
      %s374 = sshll.u32 [#allocation2], 4
      %s375 = int_to_ptr.vmem [resolvable:$true] %s374
      %s376 = sshll.u32 %s4, 4
      %s377 = int_to_ptr.hbm [resolvable:$true] %s376
      %382 = dma.vmem_to_hbm [thread:$0]  %s375, 256, %s377, [#allocation3], 128, 128, 8
    $region21: #{tpu_custom_call.1} parent=1 // pred_fallthru
      _
    // Predicated region
    $region22: #{tpu_custom_call.1} parent=1 // pred_check
      _
    $region23: #{tpu_custom_call.1} parent=1 // pred_check_branch
      %384 = sbr.rel (0) target = $region25
    $region24: #{tpu_custom_call.1} parent=1 // pred_region
      %386 = vsyncadd [#allocation5], 0
      %s388 = sshll.u32 [#allocation4], 4
      %s389 = int_to_ptr.vmem [resolvable:$true] %s388
      %s390 = sshll.u32 %s5, 4
      %s391 = int_to_ptr.hbm [resolvable:$true] %s390
      %393 = dma.vmem_to_hbm [thread:$0]  %s389, 16, %s391, [#allocation5]
    $region25: #{tpu_custom_call.1} parent=1 // pred_fallthru
      _
    // Predicated region
    $region26: #{tpu_custom_call.1} parent=1 // pred_check
      _
    $region27: #{tpu_custom_call.1} parent=1 // pred_check_branch
      %395 = sbr.rel (0) target = $region29
    $region28: #{tpu_custom_call.1} parent=1 // pred_region
      %397 = dma.done [#allocation3], 256
    $region29: #{tpu_custom_call.1} parent=1 // pred_fallthru
      _
    // Predicated region
    $region30: #{tpu_custom_call.1} parent=1 // pred_check
      _
    $region31: #{tpu_custom_call.1} parent=1 // pred_check_branch
      %399 = sbr.rel (0) target = $region33
    $region32: #{tpu_custom_call.1} parent=1 // pred_region
      %401 = dma.done [#allocation5], 16
    $region33: #{tpu_custom_call.1} parent=1 // pred_fallthru
      _
    %402 = vsyncpa [#allocation3], 1
    %403 = vsyncpa [#allocation5], 1

</llo_original>
